<compile_context>
chip_gen: v7x
topology: tpu7x:2x2x1
jax: 0.10.0
libtpu: 0.0.40
codegen_flags: <defaults>
</compile_context>

<pallas_src>
import functools
import numpy as np
import jax
import jax.numpy as jnp
from jax import lax
from jax.experimental import pallas as pl
from jax.experimental.pallas import tpu as pltpu


# ----------------------------------------------------------------------------
# Fused forward kernel: everything stays VMEM-resident.
#   x:       (B, E)
#   wqkv_t:  (E, 3E)  pre-transposed concat of [Wq/sqrt(D), Wk, Wv]
#   bqkv:    (1, 3E)  concat of [bq/sqrt(D), bk, bv]
#   wf_t:    (E, E)   pre-transposed output-projection weight
#   bf:      (1, E)
#   out:     (B, E)
# ----------------------------------------------------------------------------
def _fused_mha_kernel(x_ref, wqkv_ref, bqkv_ref, wf_ref, bf_ref, o_ref,
                      *, num_head, head_dim):
    H, D = num_head, head_dim
    E = H * D

    x = x_ref[...]                                        # (B, E)

    # --- fused QKV projection (one MXU pass, weights already transposed) -----
    qkv = jnp.dot(x, wqkv_ref[...],
                  preferred_element_type=jnp.float32) + bqkv_ref[...]   # (B, 3E)

    # Lane slices only — never split the lane dim (E) into (H, D) via reshape.
    q2d = qkv[:, 0 * E:1 * E]                             # (B, E), pre-scaled by 1/sqrt(D)
    k2d = qkv[:, 1 * E:2 * E]                             # (B, E)
    v2d = qkv[:, 2 * E:3 * E]                             # (B, E)

    # --- attention core on the VPU --------------------------------------------
    # Reference semantics (head-axis contraction, softmax over D):
    #   energy[b, d1, d2] = sum_h k[b, h, d1] * q[b, h, d2]
    #   f[b, h, d1]       = sum_d2 p[b, d1, d2] * v[b, h, d2]
    # These are DxD / DxH micro-matmuls per batch element — far too small for
    # the MXU, so do them as broadcast-multiply + reductions (unrolled over H).
    energy = None
    for h in range(H):                                    # static unroll, H tiny
        kh = k2d[:, h * D:(h + 1) * D]                    # (B, D) lane slice
        qh = q2d[:, h * D:(h + 1) * D]                    # (B, D)
        term = kh[:, :, None] * qh[:, None, :]            # (B, D, D) VPU outer product
        energy = term if energy is None else energy + term

    # numerically stable softmax over last axis (matches torch.softmax(-1);
    # the 1/sqrt(head_dim) scale is already folded into q via the weights).
    energy = energy - jnp.max(energy, axis=-1, keepdims=True)
    p = jnp.exp(energy)                                   # EUP
    p = p * pl.reciprocal(jnp.sum(p, axis=-1, keepdims=True), approx=True)
    # Dropout(0.35) == identity in eval mode.

    # f, head by head, assembled directly in lane-dense (B, E) head-major
    # order == reference's f.permute(0, 2, 1).reshape(batch, -1).
    f_parts = []
    for h in range(H):
        vh = v2d[:, h * D:(h + 1) * D]                    # (B, D)
        f_parts.append(jnp.sum(p * vh[:, None, :], axis=-1))   # (B, D)
    f_flat = jnp.concatenate(f_parts, axis=-1)            # (B, E)

    # --- output projection (MXU) ----------------------------------------------
    out = jnp.dot(f_flat, wf_ref[...],
                  preferred_element_type=jnp.float32) + bf_ref[...]
    o_ref[...] = out                                      # (B, E), lane-dense


# ----------------------------------------------------------------------------
# One-time, host-side parameter prep (hoisted out of the per-call path):
#   * fuse Wq/Wk/Wv into one weight, fold 1/sqrt(head_dim) into Wq & bq,
#   * pre-transpose to (in_features, out_features) so the kernel's projections
#     need no in-kernel weight relayout.
# ----------------------------------------------------------------------------
def prepare_params(params, num_head):
    E = params["wq"].shape[0]
    assert E % num_head == 0
    D = E // num_head
    scale = jnp.float32(1.0 / np.sqrt(np.float32(D)))
    wqkv_t = jnp.concatenate(
        [(params["wq"] * scale).T, params["wk"].T, params["wv"].T], axis=1)   # (E, 3E)
    bqkv = jnp.concatenate(
        [params["bq"] * scale, params["bk"], params["bv"]]).reshape(1, 3 * E)
    return {
        "wqkv_t": wqkv_t,
        "bqkv": bqkv,
        "wf_t": params["wf"].T,                # (E, E)
        "bf": params["bf"].reshape(1, E),
    }


# ----------------------------------------------------------------------------
# Wrapper: one pallas_call, no grid, whole (tiny) problem resident in VMEM.
# ----------------------------------------------------------------------------
def multihead_attn_forward(x, prepped, num_head):
    B, E = x.shape
    assert E % num_head == 0
    D = E // num_head

    kernel = functools.partial(_fused_mha_kernel, num_head=num_head, head_dim=D)
    vmem = pl.BlockSpec(memory_space=pltpu.MemorySpace.VMEM)

    flops = (2 * B * E * (3 * E)          # QKV projection
             + 4 * B * num_head * D * D   # energy + f contractions
             + 2 * B * E * E)             # output projection
    bytes_accessed = 4 * (B * E + E * 3 * E + 3 * E + E * E + E + B * E)
    cost = pl.CostEstimate(flops=flops, transcendentals=B * D * D,
                           bytes_accessed=bytes_accessed)

    return pl.pallas_call(
        kernel,
        out_shape=jax.ShapeDtypeStruct((B, E), jnp.float32),
        in_specs=[vmem, vmem, vmem, vmem, vmem],
        out_specs=vmem,
        cost_estimate=cost,
        # NOTE: at production sizes (e.g. E=1024, large B) cast x/weights to
        # bf16 for the MXU, add a batch-parallel grid (dimension_semantics=
        # ("parallel", ...), uses both v7x TensorCores), tile wqkv_t/wf_t along
        # the output-feature axis, and set vmem_limit_bytes via
        # pltpu.CompilerParams (v7x: 64 MiB VMEM/TC, v5e: 16 MiB scoped
        # default). Unnecessary at these toy sizes, where everything is one tile.
    )(x, prepped["wqkv_t"], prepped["bqkv"], prepped["wf_t"], prepped["bf"])


# ----------------------------------------------------------------------------
# Pure-JAX reference (mirrors the PyTorch forward, dropout = identity)
# ----------------------------------------------------------------------------
def reference_forward(x, params, num_head):
    B, E = x.shape
    D = E // num_head
    q = x @ params["wq"].T + params["bq"]
    k = x @ params["wk"].T + params["bk"]
    v = x @ params["wv"].T + params["bv"]
    qh = q.reshape(B, -1, D)
    kh = k.reshape(B, -1, D)
    vh = v.reshape(B, -1, D)
    energy = jnp.matmul(jnp.transpose(kh, (0, 2, 1)), qh)
    energy = energy / jnp.sqrt(jnp.float32(D))
    energy = jax.nn.softmax(energy, axis=-1)
    f = jnp.matmul(energy, jnp.transpose(vh, (0, 2, 1)))
    f = jnp.transpose(f, (0, 2, 1)).reshape(B, -1)
    return f @ params["wf"].T + params["bf"]


if __name__ == "__main__":
    # small shapes consistent with the module: x is (batch, embed_dim)
    B = 2
    EMBED_DIM = 32
    NUM_HEAD = 4

    key = jax.random.PRNGKey(0)
    ks = jax.random.split(key, 9)
    bound = 1.0 / np.sqrt(EMBED_DIM)   # PyTorch nn.Linear default init range

    def u(k, shape):
        return jax.random.uniform(k, shape, jnp.float32, -bound, bound)

    params = {
        "wq": u(ks[0], (EMBED_DIM, EMBED_DIM)), "bq": u(ks[1], (EMBED_DIM,)),
        "wk": u(ks[2], (EMBED_DIM, EMBED_DIM)), "bk": u(ks[3], (EMBED_DIM,)),
        "wv": u(ks[4], (EMBED_DIM, EMBED_DIM)), "bv": u(ks[5], (EMBED_DIM,)),
        "wf": u(ks[6], (EMBED_DIM, EMBED_DIM)), "bf": u(ks[7], (EMBED_DIM,)),
    }
    x = jax.random.normal(ks[8], (B, EMBED_DIM), jnp.float32)

    # One-time weight prep (not part of the per-call path).
    prepped = prepare_params(params, NUM_HEAD)

    out = jax.block_until_ready(multihead_attn_forward(x, prepped, NUM_HEAD))
    ref = jax.block_until_ready(reference_forward(x, params, NUM_HEAD))

    assert out.shape == (B, EMBED_DIM), out.shape
    np.testing.assert_allclose(np.asarray(out), np.asarray(ref),
                               rtol=1e-2, atol=1e-2)
    print("KERNEL_OK")
</pallas_src>

<mosaic_0001>
module attributes {stable_mosaic.version = 11 : i64} {
  func.func @_fused_mha_kernel(%arg0: memref<2x32xf32, #tpu.memory_space<vmem>>, %arg1: memref<32x96xf32, #tpu.memory_space<vmem>>, %arg2: memref<1x96xf32, #tpu.memory_space<vmem>>, %arg3: memref<32x32xf32, #tpu.memory_space<vmem>>, %arg4: memref<1x32xf32, #tpu.memory_space<vmem>>, %arg5: memref<2x32xf32, #tpu.memory_space<vmem>>) attributes {dimension_semantics = [], scalar_prefetch = 0 : i64, scratch_operands = 0 : i64, tpu.core_type = #tpu.core_type<tc>} {
    %c0 = arith.constant 0 : index
    %c0_0 = arith.constant 0 : index
    %0 = vector.load %arg0[%c0, %c0_0] : memref<2x32xf32, #tpu.memory_space<vmem>>, vector<2x32xf32>
    %c0_1 = arith.constant 0 : index
    %c0_2 = arith.constant 0 : index
    %1 = vector.load %arg1[%c0_1, %c0_2] : memref<32x96xf32, #tpu.memory_space<vmem>>, vector<32x96xf32>
    %cst = arith.constant dense<0.000000e+00> : vector<2x96xf32>
    %2 = tpu.matmul %0, %1, %cst {dimension_numbers = #tpu.dot_dimension_numbers<[1], [0], [0], [1], [0, 0, 1, 1], [], []>} : vector<2x32xf32>, vector<32x96xf32>, vector<2x96xf32> -> vector<2x96xf32>
    %c0_3 = arith.constant 0 : index
    %c0_4 = arith.constant 0 : index
    %3 = vector.load %arg2[%c0_3, %c0_4] : memref<1x96xf32, #tpu.memory_space<vmem>>, vector<1x96xf32>
    %4 = vector.broadcast %3 : vector<1x96xf32> to vector<2x96xf32>
    %5 = arith.addf %2, %4 : vector<2x96xf32>
    %6 = vector.extract_strided_slice %5 {offsets = [0, 0], sizes = [2, 32], strides = [1, 1]} : vector<2x96xf32> to vector<2x32xf32>
    %7 = vector.extract_strided_slice %5 {offsets = [0, 32], sizes = [2, 32], strides = [1, 1]} : vector<2x96xf32> to vector<2x32xf32>
    %8 = vector.extract_strided_slice %5 {offsets = [0, 64], sizes = [2, 32], strides = [1, 1]} : vector<2x96xf32> to vector<2x32xf32>
    %9 = vector.extract_strided_slice %7 {offsets = [0, 0], sizes = [2, 8], strides = [1, 1]} : vector<2x32xf32> to vector<2x8xf32>
    %10 = vector.extract_strided_slice %6 {offsets = [0, 0], sizes = [2, 8], strides = [1, 1]} : vector<2x32xf32> to vector<2x8xf32>
    %11 = vector.shape_cast %9 : vector<2x8xf32> to vector<2x8x1xf32>
    %12 = vector.shape_cast %10 : vector<2x8xf32> to vector<2x1x8xf32>
    %13 = vector.broadcast %11 : vector<2x8x1xf32> to vector<2x8x8xf32>
    %14 = vector.broadcast %12 : vector<2x1x8xf32> to vector<2x8x8xf32>
    %15 = arith.mulf %13, %14 : vector<2x8x8xf32>
    %16 = vector.extract_strided_slice %7 {offsets = [0, 8], sizes = [2, 8], strides = [1, 1]} : vector<2x32xf32> to vector<2x8xf32>
    %17 = vector.extract_strided_slice %6 {offsets = [0, 8], sizes = [2, 8], strides = [1, 1]} : vector<2x32xf32> to vector<2x8xf32>
    %18 = vector.shape_cast %16 : vector<2x8xf32> to vector<2x8x1xf32>
    %19 = vector.shape_cast %17 : vector<2x8xf32> to vector<2x1x8xf32>
    %20 = vector.broadcast %18 : vector<2x8x1xf32> to vector<2x8x8xf32>
    %21 = vector.broadcast %19 : vector<2x1x8xf32> to vector<2x8x8xf32>
    %22 = arith.mulf %20, %21 : vector<2x8x8xf32>
    %23 = arith.addf %15, %22 : vector<2x8x8xf32>
    %24 = vector.extract_strided_slice %7 {offsets = [0, 16], sizes = [2, 8], strides = [1, 1]} : vector<2x32xf32> to vector<2x8xf32>
    %25 = vector.extract_strided_slice %6 {offsets = [0, 16], sizes = [2, 8], strides = [1, 1]} : vector<2x32xf32> to vector<2x8xf32>
    %26 = vector.shape_cast %24 : vector<2x8xf32> to vector<2x8x1xf32>
    %27 = vector.shape_cast %25 : vector<2x8xf32> to vector<2x1x8xf32>
    %28 = vector.broadcast %26 : vector<2x8x1xf32> to vector<2x8x8xf32>
    %29 = vector.broadcast %27 : vector<2x1x8xf32> to vector<2x8x8xf32>
    %30 = arith.mulf %28, %29 : vector<2x8x8xf32>
    %31 = arith.addf %23, %30 : vector<2x8x8xf32>
    %32 = vector.extract_strided_slice %7 {offsets = [0, 24], sizes = [2, 8], strides = [1, 1]} : vector<2x32xf32> to vector<2x8xf32>
    %33 = vector.extract_strided_slice %6 {offsets = [0, 24], sizes = [2, 8], strides = [1, 1]} : vector<2x32xf32> to vector<2x8xf32>
    %34 = vector.shape_cast %32 : vector<2x8xf32> to vector<2x8x1xf32>
    %35 = vector.shape_cast %33 : vector<2x8xf32> to vector<2x1x8xf32>
    %36 = vector.broadcast %34 : vector<2x8x1xf32> to vector<2x8x8xf32>
    %37 = vector.broadcast %35 : vector<2x1x8xf32> to vector<2x8x8xf32>
    %38 = arith.mulf %36, %37 : vector<2x8x8xf32>
    %39 = arith.addf %31, %38 : vector<2x8x8xf32>
    %cst_5 = arith.constant dense<0xFF800000> : vector<2x8xf32>
    %40 = vector.multi_reduction <maximumf>, %39, %cst_5 [2] : vector<2x8x8xf32> to vector<2x8xf32>
    %41 = vector.shape_cast %40 : vector<2x8xf32> to vector<2x8x1xf32>
    %42 = vector.broadcast %41 : vector<2x8x1xf32> to vector<2x8x8xf32>
    %43 = arith.subf %39, %42 : vector<2x8x8xf32>
    %44 = math.exp %43 : vector<2x8x8xf32>
    %cst_6 = arith.constant dense<0.000000e+00> : vector<2x8xf32>
    %45 = vector.multi_reduction <add>, %44, %cst_6 [2] : vector<2x8x8xf32> to vector<2x8xf32>
    %46 = vector.shape_cast %45 : vector<2x8xf32> to vector<2x8x1xf32>
    %47 = tpu.reciprocal %46 {approx = true} : vector<2x8x1xf32> -> vector<2x8x1xf32>
    %48 = vector.broadcast %47 : vector<2x8x1xf32> to vector<2x8x8xf32>
    %49 = arith.mulf %44, %48 : vector<2x8x8xf32>
    %50 = vector.extract_strided_slice %8 {offsets = [0, 0], sizes = [2, 8], strides = [1, 1]} : vector<2x32xf32> to vector<2x8xf32>
    %51 = vector.shape_cast %50 : vector<2x8xf32> to vector<2x1x8xf32>
    %52 = vector.broadcast %51 : vector<2x1x8xf32> to vector<2x8x8xf32>
    %53 = arith.mulf %49, %52 : vector<2x8x8xf32>
    %cst_7 = arith.constant dense<0.000000e+00> : vector<2x8xf32>
    %54 = vector.multi_reduction <add>, %53, %cst_7 [2] : vector<2x8x8xf32> to vector<2x8xf32>
    %55 = vector.extract_strided_slice %8 {offsets = [0, 8], sizes = [2, 8], strides = [1, 1]} : vector<2x32xf32> to vector<2x8xf32>
    %56 = vector.shape_cast %55 : vector<2x8xf32> to vector<2x1x8xf32>
    %57 = vector.broadcast %56 : vector<2x1x8xf32> to vector<2x8x8xf32>
    %58 = arith.mulf %49, %57 : vector<2x8x8xf32>
    %cst_8 = arith.constant dense<0.000000e+00> : vector<2x8xf32>
    %59 = vector.multi_reduction <add>, %58, %cst_8 [2] : vector<2x8x8xf32> to vector<2x8xf32>
    %60 = vector.extract_strided_slice %8 {offsets = [0, 16], sizes = [2, 8], strides = [1, 1]} : vector<2x32xf32> to vector<2x8xf32>
    %61 = vector.shape_cast %60 : vector<2x8xf32> to vector<2x1x8xf32>
    %62 = vector.broadcast %61 : vector<2x1x8xf32> to vector<2x8x8xf32>
    %63 = arith.mulf %49, %62 : vector<2x8x8xf32>
    %cst_9 = arith.constant dense<0.000000e+00> : vector<2x8xf32>
    %64 = vector.multi_reduction <add>, %63, %cst_9 [2] : vector<2x8x8xf32> to vector<2x8xf32>
    %65 = vector.extract_strided_slice %8 {offsets = [0, 24], sizes = [2, 8], strides = [1, 1]} : vector<2x32xf32> to vector<2x8xf32>
    %66 = vector.shape_cast %65 : vector<2x8xf32> to vector<2x1x8xf32>
    %67 = vector.broadcast %66 : vector<2x1x8xf32> to vector<2x8x8xf32>
    %68 = arith.mulf %49, %67 : vector<2x8x8xf32>
    %cst_10 = arith.constant dense<0.000000e+00> : vector<2x8xf32>
    %69 = vector.multi_reduction <add>, %68, %cst_10 [2] : vector<2x8x8xf32> to vector<2x8xf32>
    %70 = tpu.concatenate %54, %59, %64, %69 in 1 : vector<2x8xf32>, vector<2x8xf32>, vector<2x8xf32>, vector<2x8xf32> -> vector<2x32xf32>
    %c0_11 = arith.constant 0 : index
    %c0_12 = arith.constant 0 : index
    %71 = vector.load %arg3[%c0_11, %c0_12] : memref<32x32xf32, #tpu.memory_space<vmem>>, vector<32x32xf32>
    %cst_13 = arith.constant dense<0.000000e+00> : vector<2x32xf32>
    %72 = tpu.matmul %70, %71, %cst_13 {dimension_numbers = #tpu.dot_dimension_numbers<[1], [0], [0], [1], [0, 0, 1, 1], [], []>} : vector<2x32xf32>, vector<32x32xf32>, vector<2x32xf32> -> vector<2x32xf32>
    %c0_14 = arith.constant 0 : index
    %c0_15 = arith.constant 0 : index
    %73 = vector.load %arg4[%c0_14, %c0_15] : memref<1x32xf32, #tpu.memory_space<vmem>>, vector<1x32xf32>
    %74 = vector.broadcast %73 : vector<1x32xf32> to vector<2x32xf32>
    %75 = arith.addf %72, %74 : vector<2x32xf32>
    %c0_16 = arith.constant 0 : index
    %c0_17 = arith.constant 0 : index
    %76 = vector.load %arg5[%c0_16, %c0_17] : memref<2x32xf32, #tpu.memory_space<vmem>>, vector<2x32xf32>
    tpu.vector_store %arg5[%c0_16, %c0_17], %75 {strides = array<i32>} : memref<2x32xf32, #tpu.memory_space<vmem>>, vector<2x32xf32>,
    return
  }
}

</mosaic_0001>

<llo_original>
// kernel: tpu_custom_call.1
$region0: #{tpu_custom_call.1}
  #allocation0 [shape = 'u32[]', space=smem, size = 0x4, offset = 0x4, fixed_abs, tag = 'smem constant byte address 0x4 - core index']
  #allocation1 [shape = 'u32[144,128]{1,0:T(1,128)}', space=vmem, size = 0x12000, scoped, tag = 'internal scratch']
  %s0 = inlined_call_operand.hbm [shape: f32[2,32], index: 0, kind: input, shape index: {}]
  %s1 = inlined_call_operand.hbm [shape: f32[32,96], index: 1, kind: input, shape index: {}]
  %s2 = inlined_call_operand.vmem [shape: f32[1,96], index: 2, kind: input, shape index: {}]
  %s3 = inlined_call_operand.hbm [shape: f32[32,32], index: 3, kind: input, shape index: {}]
  %s4 = inlined_call_operand.vmem [shape: f32[1,32], index: 4, kind: input, shape index: {}]
  %s5 = inlined_call_operand.hbm [shape: f32[2,32], index: 5, kind: output, shape index: {}]
  %s6 = sld [smem:[#allocation0]]
  $region42: #{tpu_custom_call.1} parent=0
    _
  %s8 = ssub.s32 1, %s6
  %s9 = scalar_select 0, %s8, %s6
  $region1: #{tpu_custom_call.1} parent=0
    #allocation2 [shape = 'u8[1024]{0}', space=vmem, size = 0x400, scoped, tag = 'input window, operand 0, single buffered']
    #allocation3 [shape = 's32[1]{0}', space=sflag, size = 0x4, scoped, tag = 'scoped memory for tpu_custom_call.1']
    #allocation4 [shape = 's32[1]{0}', space=sflag, size = 0x4, scoped, tag = 'scoped memory for tpu_custom_call.1']
    #allocation5 [shape = 'u8[16384]{0}', space=vmem, size = 0x4000, scoped, tag = 'input window, operand 1, single buffered']
    #allocation6 [shape = 's32[1]{0}', space=sflag, size = 0x4, scoped, tag = 'scoped memory for tpu_custom_call.1']
    #allocation7 [shape = 'u8[16384]{0}', space=vmem, size = 0x4000, scoped, tag = 'input window, operand 3, single buffered']
    #allocation8 [shape = 'u8[1024]{0}', space=vmem, size = 0x400, scoped, tag = 'output window, operand 0, single buffered']
    %10 = vsyncpa [#allocation3], 0
    %11 = vsyncpa [#allocation6], 0
    %12 = vsyncpa [#allocation4], 0
    // Predicated region
    $region2: #{tpu_custom_call.1} parent=1 // pred_check
      _
    $region3: #{tpu_custom_call.1} parent=1 // pred_check_branch
      %14 = sbr.rel (0) target = $region5
    $region4: #{tpu_custom_call.1} parent=1 // pred_region
      %s16 = ssub.s32 32, 32
      %17 = vsyncadd [#allocation3], %s16
      %s19 = sshll.u32 [#allocation2], 4
      %s20 = int_to_ptr.vmem [resolvable:$true] %s19
      %22 = dma.hbm_to_vmem [thread:$0]  %s0, 32, %s20, [#allocation3]
    $region5: #{tpu_custom_call.1} parent=1 // pred_fallthru
      _
    // Predicated region
    $region6: #{tpu_custom_call.1} parent=1 // pred_check
      _
    $region7: #{tpu_custom_call.1} parent=1 // pred_check_branch
      %24 = sbr.rel (0) target = $region9
    $region8: #{tpu_custom_call.1} parent=1 // pred_region
      %s26 = ssub.s32 512, 512
      %27 = vsyncadd [#allocation6], %s26
      %s28 = sshll.u32 [#allocation5], 4
      %s29 = int_to_ptr.vmem [resolvable:$true] %s28
      %34 = dma.hbm_to_vmem [thread:$0]  %s1, 512, %s29, [#allocation6], 128, 128, 8
    $region9: #{tpu_custom_call.1} parent=1 // pred_fallthru
      _
    // Predicated region
    $region10: #{tpu_custom_call.1} parent=1 // pred_check
      _
    $region11: #{tpu_custom_call.1} parent=1 // pred_check_branch
      %36 = sbr.rel (0) target = $region13
    $region12: #{tpu_custom_call.1} parent=1 // pred_region
      _
    $region13: #{tpu_custom_call.1} parent=1 // pred_fallthru
      _
    // Predicated region
    $region14: #{tpu_custom_call.1} parent=1 // pred_check
      _
    $region15: #{tpu_custom_call.1} parent=1 // pred_check_branch
      %38 = sbr.rel (0) target = $region17
    $region16: #{tpu_custom_call.1} parent=1 // pred_region
      %s40 = ssub.s32 512, 512
      %41 = vsyncadd [#allocation6], %s40
      %s42 = sshll.u32 [#allocation7], 4
      %s43 = int_to_ptr.vmem [resolvable:$true] %s42
      %48 = dma.hbm_to_vmem [thread:$0]  %s3, 512, %s43, [#allocation6], 128, 128, 8
    $region17: #{tpu_custom_call.1} parent=1 // pred_fallthru
      _
    // Predicated region
    $region18: #{tpu_custom_call.1} parent=1 // pred_check
      _
    $region19: #{tpu_custom_call.1} parent=1 // pred_check_branch
      %50 = sbr.rel (0) target = $region21
    $region20: #{tpu_custom_call.1} parent=1 // pred_region
      _
    $region21: #{tpu_custom_call.1} parent=1 // pred_fallthru
      _
    // Predicated region
    $region22: #{tpu_custom_call.1} parent=1 // pred_check
      _
    $region23: #{tpu_custom_call.1} parent=1 // pred_check_branch
      %52 = sbr.rel (0) target = $region25
    $region24: #{tpu_custom_call.1} parent=1 // pred_region
      %53 = dma.done [#allocation3], 32
    $region25: #{tpu_custom_call.1} parent=1 // pred_fallthru
      _
    // Predicated region
    $region26: #{tpu_custom_call.1} parent=1 // pred_check
      _
    $region27: #{tpu_custom_call.1} parent=1 // pred_check_branch
      %55 = sbr.rel (0) target = $region29
    $region28: #{tpu_custom_call.1} parent=1 // pred_region
      %56 = dma.done [#allocation6], 512
    $region29: #{tpu_custom_call.1} parent=1 // pred_fallthru
      _
    // Predicated region
    $region30: #{tpu_custom_call.1} parent=1 // pred_check
      _
    $region31: #{tpu_custom_call.1} parent=1 // pred_check_branch
      %58 = sbr.rel (0) target = $region33
    $region32: #{tpu_custom_call.1} parent=1 // pred_region
      %59 = dma.done [#allocation6], 512
    $region33: #{tpu_custom_call.1} parent=1 // pred_fallthru
      _
    %v60 = vld [vmem:[#allocation2] sm:$0x3]
    %v61 = vld [vmem:[#allocation5] sm:$0xff]
    %v62 = vld [vmem:[#allocation5 + $0x8] sm:$0xff]
    %v63 = vld [vmem:[#allocation5 + $0x10] sm:$0xff]
    %v64 = vld [vmem:[#allocation5 + $0x18] sm:$0xff]
    %v65 = vld [vmem:[%s2] sm:$0x1]
    %v67 = vlaneseq
    %v68 = vshrl.u32 %v67, 7
    %v69 = vsub.s32 0, %v68
    %v70 = vrot.slane %v65, %v69
    %vm72 = vcmask 261120
    %v74 = vsel %vm72, %v60, 0
    %76 = vmatprep.subr.mxu0 0.0
    %77 = vmatpush1.msra.mxu0 %v61
    %78 = vmatprep.subr.mxu0 0.0
    %79 = vmatpush1.msra.mxu0 %v62
    %80 = vmatprep.subr.mxu0 0.0
    %81 = vmatpush1.msra.mxu0 %v63
    %82 = vmatprep.subr.mxu0 0.0
    %83 = vmatpush1.msra.mxu0 %v64
    %84 = vmatprep.subr.mxu0 0.0
    %85 = vmatpush1.msra.mxu0 0.0
    %86 = vmatprep.subr.mxu0 0.0
    %87 = vmatpush1.msra.mxu0 0.0
    %88 = vmatprep.subr.mxu0 0.0
    %89 = vmatpush1.msra.mxu0 0.0
    %90 = vmatprep.subr.mxu0 0.0
    %91 = vmatpush1.msra.mxu0 0.0
    %92 = vmatprep.subr.mxu0 0.0
    %93 = vmatpush1.msra.mxu0 0.0
    %94 = vmatprep.subr.mxu0 0.0
    %95 = vmatpush1.msra.mxu0 0.0
    %96 = vmatprep.subr.mxu0 0.0
    %97 = vmatpush1.msra.mxu0 0.0
    %98 = vmatprep.subr.mxu0 0.0
    %99 = vmatpush1.msra.mxu0 0.0
    %100 = vmatprep.subr.mxu0 0.0
    %101 = vmatpush1.msra.mxu0 0.0
    %102 = vmatprep.subr.mxu0 0.0
    %103 = vmatpush1.msra.mxu0 0.0
    %104 = vmatprep.subr.mxu0 0.0
    %105 = vmatpush1.msra.mxu0 0.0
    %106 = vmatprep.subr.mxu0 0.0
    %107 = vmatpush1.msra.mxu0 0.0
    %108 = vmatprep.subr.mxu0 0.0
    %109 = vmatpush1.msra.mxu0 0.0
    %110 = vmatprep.subr.mxu0 0.0
    %111 = vmatpush1.msra.mxu0 0.0
    %112 = vmatprep.subr.mxu0 0.0
    %113 = vmatpush1.msra.mxu0 0.0
    %114 = vmatprep.subr.mxu0 0.0
    %115 = vmatpush1.msra.mxu0 0.0
    %116 = vmatprep.subr.mxu0 0.0
    %117 = vmatpush1.msra.mxu0 0.0
    %118 = vmatprep.subr.mxu0 0.0
    %119 = vmatpush1.msra.mxu0 0.0
    %120 = vmatprep.subr.mxu0 0.0
    %121 = vmatpush1.msra.mxu0 0.0
    %122 = vmatprep.subr.mxu0 0.0
    %123 = vmatpush1.msra.mxu0 0.0
    %124 = vmatprep.subr.mxu0 0.0
    %125 = vmatpush1.msra.mxu0 0.0
    %126 = vmatprep.subr.mxu0 0.0
    %127 = vmatpush1.msra.mxu0 0.0
    %128 = vmatprep.subr.mxu0 0.0
    %129 = vmatpush1.msra.mxu0 0.0
    %130 = vmatprep.subr.mxu0 0.0
    %131 = vmatpush1.msra.mxu0 0.0
    %132 = vmatprep.subr.mxu0 0.0
    %133 = vmatpush1.msra.mxu0 0.0
    %134 = vmatprep.subr.mxu0 0.0
    %135 = vmatpush1.msra.mxu0 0.0
    %136 = vmatprep.subr.mxu0 0.0
    %137 = vmatpush1.msra.mxu0 0.0
    %138 = vmatprep.subr.mxu0 0.0
    %139 = vmatpush1.msra.mxu0 0.0
    %140 = vmatprep.mubr.f32.mxu0 0.0
    %141 = vmatmul.mubr.f32.gmra.mrb[0].mxu0 %v74
    %v142 = vpop.f32.mrb[0].mxu0
    %v143 = vadd.f32 %v70, %v142
    %v144 = vpop.f32.mrb[0].mxu0
    %145 = vdwg.mxu0
    %v146 = vlaneseq
    %v147 = vshrl.u32 %v146, 7
    %v148 = vsub.s32 0, %v147
    %v149 = vrot.slane %v143, %v148
    %s151 = sor.u32 256, 32
    %152 = vbcast.lane.b32.xlu0 %v149, %s151
    %v153 = vpop.permute.xlu0 %152
    %v154 = vlaneseq
    %v155 = vshrl.u32 %v154, 7
    %v156 = vsub.s32 1, %v155
    %v157 = vrot.slane %v143, %v156
    %s159 = sor.u32 256, 32
    %160 = vbcast.lane.b32.xlu0 %v157, %s159
    %v161 = vpop.permute.xlu0 %160
    %v164 = vunpack.c.l.s4 1966171168
    %v165 = vunpack.c.0.s8 %v164
    %v166 = vlaneseq
    %v167 = vshrl.u32 %v166, 7
    %v168 = vsub.s32 %v165, %v167
    %v169 = vrot.slane %v143, %v168
    %v170 = vcombine.high %v169, %v169
    %v172 = vunpack.c.l.s4 1966171168
    %v173 = vunpack.c.0.s8 %v172
    %v174 = vlaneseq
    %v175 = vshrl.u32 %v174, 7
    %v176 = vsub.s32 %v173, %v175
    %v177 = vrot.slane %v169, %v176
    %v179 = vunpack.c.l.s4 1966171168
    %v180 = vunpack.c.0.s8 %v179
    %v181 = vlaneseq
    %v182 = vshrl.u32 %v181, 7
    %v183 = vsub.s32 %v180, %v182
    %v184 = vrot.slane %v170, %v183
    %v185 = vlaneseq
    %v186 = vshrl.u32 %v185, 7
    %v187 = vsub.s32 0, %v186
    %v188 = vrot.slane %v177, %v187
    %v189 = vlaneseq
    %v190 = vshrl.u32 %v189, 7
    %v191 = vsub.s32 0, %v190
    %v192 = vrot.slane %v184, %v191
    %v195 = vmul.f32 %v153, %v188
    %v196 = vmul.f32 %v161, %v192
    %s198 = sor.u32 256, 40
    %199 = vbcast.lane.b32.xlu0 %v149, %s198
    %v200 = vpop.permute.xlu0 %199
    %s202 = sor.u32 256, 40
    %203 = vbcast.lane.b32.xlu0 %v157, %s202
    %v204 = vpop.permute.xlu0 %203
    %v205 = vmul.f32 %v200, %v188
    %v206 = vmul.f32 %v204, %v192
    %209 = vrot.lane.b32.xlu0 %v205, 120
    %v210 = vpop.permute.xlu0 %209
    %211 = vrot.lane.b32.xlu0 %v206, 120
    %v212 = vpop.permute.xlu0 %211
    %v215 = vadd.f32 %v195, %v210
    %v216 = vadd.f32 %v196, %v212
    %s218 = sor.u32 256, 48
    %219 = vbcast.lane.b32.xlu0 %v149, %s218
    %v220 = vpop.permute.xlu0 %219
    %s222 = sor.u32 256, 48
    %223 = vbcast.lane.b32.xlu0 %v157, %s222
    %v224 = vpop.permute.xlu0 %223
    %v225 = vmul.f32 %v220, %v188
    %v226 = vmul.f32 %v224, %v192
    %229 = vrot.lane.b32.xlu0 %v225, 112
    %v230 = vpop.permute.xlu0 %229
    %231 = vrot.lane.b32.xlu0 %v226, 112
    %v232 = vpop.permute.xlu0 %231
    %v235 = vadd.f32 %v215, %v230
    %v236 = vadd.f32 %v216, %v232
    %s238 = sor.u32 256, 56
    %239 = vbcast.lane.b32.xlu0 %v149, %s238
    %v240 = vpop.permute.xlu0 %239
    %s242 = sor.u32 256, 56
    %243 = vbcast.lane.b32.xlu0 %v157, %s242
    %v244 = vpop.permute.xlu0 %243
    %v245 = vmul.f32 %v240, %v188
    %v246 = vmul.f32 %v244, %v192
    %249 = vrot.lane.b32.xlu0 %v245, 104
    %v250 = vpop.permute.xlu0 %249
    %251 = vrot.lane.b32.xlu0 %v246, 104
    %v252 = vpop.permute.xlu0 %251
    %v255 = vadd.f32 %v235, %v250
    %v256 = vadd.f32 %v236, %v252
    %vm257 = vcmask 64512
    %v258 = vsel %vm257, %v255, -inf
    %259 = vmax.xlane.f32.xlu0 %v258
    %v260 = vpop.xlane.xlu0 %259
    %v261 = vsel %vm257, %v256, -inf
    %262 = vmax.xlane.f32.xlu0 %v261
    %v263 = vpop.xlane.xlu0 %262
    %v264 = vsub.f32 %v255, %v260
    %v265 = vsub.f32 %v256, %v263
    %v266 = vmul.f32 %v264, 1.442695
    %v267 = vpow.pop %v266
    %v268 = vmul.f32 %v265, 1.442695
    %v269 = vpow.pop %v268
    %v270 = vsel %vm257, %v267, 0.0
    %271 = vadd.xlane.f32.xlu0 %v270
    %v272 = vpop.xlane.xlu0 %271
    %v273 = vsel %vm257, %v269, 0.0
    %274 = vadd.xlane.f32.xlu0 %v273
    %v275 = vpop.xlane.xlu0 %274
    %v276 = vrcp.pop %v272
    %v277 = vrcp.pop %v275
    %v278 = vmul.f32 %v267, %v276
    %v279 = vmul.f32 %v269, %v277
    %280 = vrot.lane.b32.xlu0 %v188, 64
    %v281 = vpop.permute.xlu0 %280
    %282 = vrot.lane.b32.xlu0 %v192, 64
    %v283 = vpop.permute.xlu0 %282
    %v286 = vmul.f32 %v278, %v281
    %v287 = vmul.f32 %v279, %v283
    %v288 = vsel %vm257, %v286, 0.0
    %289 = vadd.xlane.f32.xlu0 %v288
    %v290 = vpop.xlane.xlu0 %289
    %v291 = vsel %vm257, %v287, 0.0
    %292 = vadd.xlane.f32.xlu0 %v291
    %v293 = vpop.xlane.xlu0 %292
    %294 = vrot.lane.b32.xlu0 %v188, 56
    %v295 = vpop.permute.xlu0 %294
    %296 = vrot.lane.b32.xlu0 %v192, 56
    %v297 = vpop.permute.xlu0 %296
    %v300 = vmul.f32 %v278, %v295
    %v301 = vmul.f32 %v279, %v297
    %v302 = vsel %vm257, %v300, 0.0
    %303 = vadd.xlane.f32.xlu0 %v302
    %v304 = vpop.xlane.xlu0 %303
    %v305 = vsel %vm257, %v301, 0.0
    %306 = vadd.xlane.f32.xlu0 %v305
    %v307 = vpop.xlane.xlu0 %306
    %308 = vrot.lane.b32.xlu0 %v188, 48
    %v309 = vpop.permute.xlu0 %308
    %310 = vrot.lane.b32.xlu0 %v192, 48
    %v311 = vpop.permute.xlu0 %310
    %v314 = vmul.f32 %v278, %v309
    %v315 = vmul.f32 %v279, %v311
    %v316 = vsel %vm257, %v314, 0.0
    %317 = vadd.xlane.f32.xlu0 %v316
    %v318 = vpop.xlane.xlu0 %317
    %v319 = vsel %vm257, %v315, 0.0
    %320 = vadd.xlane.f32.xlu0 %v319
    %v321 = vpop.xlane.xlu0 %320
    %322 = vrot.lane.b32.xlu0 %v188, 40
    %v323 = vpop.permute.xlu0 %322
    %324 = vrot.lane.b32.xlu0 %v192, 40
    %v325 = vpop.permute.xlu0 %324
    %v328 = vmul.f32 %v278, %v323
    %v329 = vmul.f32 %v279, %v325
    %v330 = vsel %vm257, %v328, 0.0
    %331 = vadd.xlane.f32.xlu0 %v330
    %v332 = vpop.xlane.xlu0 %331
    %v333 = vsel %vm257, %v329, 0.0
    %334 = vadd.xlane.f32.xlu0 %v333
    %v335 = vpop.xlane.xlu0 %334
    %v338 = vlaneseq
    %v339 = vand.u32 %v338, 127
    %v340 = vlaneseq
    %v341 = vshrl.u32 %v340, 7
    %v342 = vsub.s32 %v339, %v341
    %v343 = vrot.slane %v290, %v342
    %v344 = vlaneseq
    %v345 = vshrl.u32 %v344, 7
    %v346 = vsub.s32 %v339, %v345
    %v347 = vrot.slane %v293, %v346
    %vm348 = vcmask 1041409
    %v349 = vsel %vm348, %v347, %v343
    %v353 = vadd.s32 %v339, 4294967288
    %v354 = vlaneseq
    %v355 = vshrl.u32 %v354, 7
    %v356 = vsub.s32 %v353, %v355
    %v357 = vrot.slane %v304, %v356
    %v358 = vlaneseq
    %v359 = vshrl.u32 %v358, 7
    %v360 = vsub.s32 %v353, %v359
    %v361 = vrot.slane %v307, %v360
    %v362 = vsel %vm348, %v361, %v357
    %v366 = vadd.s32 %v339, 4294967280
    %v367 = vlaneseq
    %v368 = vshrl.u32 %v367, 7
    %v369 = vsub.s32 %v366, %v368
    %v370 = vrot.slane %v318, %v369
    %v371 = vlaneseq
    %v372 = vshrl.u32 %v371, 7
    %v373 = vsub.s32 %v366, %v372
    %v374 = vrot.slane %v321, %v373
    %v375 = vsel %vm348, %v374, %v370
    %v379 = vadd.s32 %v339, 4294967272
    %v380 = vlaneseq
    %v381 = vshrl.u32 %v380, 7
    %v382 = vsub.s32 %v379, %v381
    %v383 = vrot.slane %v332, %v382
    %v384 = vlaneseq
    %v385 = vshrl.u32 %v384, 7
    %v386 = vsub.s32 %v379, %v385
    %v387 = vrot.slane %v335, %v386
    %v388 = vsel %vm348, %v387, %v383
    %v390 = vsel %vm257, %v349, %v362
    %vm391 = vcmask 130048
    %v392 = vsel %vm391, %v390, %v375
    %vm393 = vcmask 195584
    %v394 = vsel %vm393, %v392, %v388
    %v395 = vld [vmem:[#allocation7] sm:$0xff]
    %v396 = vld [vmem:[#allocation7 + $0x8] sm:$0xff]
    %v397 = vld [vmem:[#allocation7 + $0x10] sm:$0xff]
    %v398 = vld [vmem:[#allocation7 + $0x18] sm:$0xff]
    %v399 = vld [vmem:[%s4] sm:$0x1]
    %v401 = vlaneseq
    %v402 = vshrl.u32 %v401, 7
    %v403 = vsub.s32 0, %v402
    %v404 = vrot.slane %v399, %v403
    %v407 = vsel %vm72, %v394, 0
    %409 = vmatprep.subr.mxu0 0.0
    %410 = vmatpush1.msra.mxu0 %v395
    %411 = vmatprep.subr.mxu0 0.0
    %412 = vmatpush1.msra.mxu0 %v396
    %413 = vmatprep.subr.mxu0 0.0
    %414 = vmatpush1.msra.mxu0 %v397
    %415 = vmatprep.subr.mxu0 0.0
    %416 = vmatpush1.msra.mxu0 %v398
    %417 = vmatprep.subr.mxu0 0.0
    %418 = vmatpush1.msra.mxu0 0.0
    %419 = vmatprep.subr.mxu0 0.0
    %420 = vmatpush1.msra.mxu0 0.0
    %421 = vmatprep.subr.mxu0 0.0
    %422 = vmatpush1.msra.mxu0 0.0
    %423 = vmatprep.subr.mxu0 0.0
    %424 = vmatpush1.msra.mxu0 0.0
    %425 = vmatprep.subr.mxu0 0.0
    %426 = vmatpush1.msra.mxu0 0.0
    %427 = vmatprep.subr.mxu0 0.0
    %428 = vmatpush1.msra.mxu0 0.0
    %429 = vmatprep.subr.mxu0 0.0
    %430 = vmatpush1.msra.mxu0 0.0
    %431 = vmatprep.subr.mxu0 0.0
    %432 = vmatpush1.msra.mxu0 0.0
    %433 = vmatprep.subr.mxu0 0.0
    %434 = vmatpush1.msra.mxu0 0.0
    %435 = vmatprep.subr.mxu0 0.0
    %436 = vmatpush1.msra.mxu0 0.0
    %437 = vmatprep.subr.mxu0 0.0
    %438 = vmatpush1.msra.mxu0 0.0
    %439 = vmatprep.subr.mxu0 0.0
    %440 = vmatpush1.msra.mxu0 0.0
    %441 = vmatprep.subr.mxu0 0.0
    %442 = vmatpush1.msra.mxu0 0.0
    %443 = vmatprep.subr.mxu0 0.0
    %444 = vmatpush1.msra.mxu0 0.0
    %445 = vmatprep.subr.mxu0 0.0
    %446 = vmatpush1.msra.mxu0 0.0
    %447 = vmatprep.subr.mxu0 0.0
    %448 = vmatpush1.msra.mxu0 0.0
    %449 = vmatprep.subr.mxu0 0.0
    %450 = vmatpush1.msra.mxu0 0.0
    %451 = vmatprep.subr.mxu0 0.0
    %452 = vmatpush1.msra.mxu0 0.0
    %453 = vmatprep.subr.mxu0 0.0
    %454 = vmatpush1.msra.mxu0 0.0
    %455 = vmatprep.subr.mxu0 0.0
    %456 = vmatpush1.msra.mxu0 0.0
    %457 = vmatprep.subr.mxu0 0.0
    %458 = vmatpush1.msra.mxu0 0.0
    %459 = vmatprep.subr.mxu0 0.0
    %460 = vmatpush1.msra.mxu0 0.0
    %461 = vmatprep.subr.mxu0 0.0
    %462 = vmatpush1.msra.mxu0 0.0
    %463 = vmatprep.subr.mxu0 0.0
    %464 = vmatpush1.msra.mxu0 0.0
    %465 = vmatprep.subr.mxu0 0.0
    %466 = vmatpush1.msra.mxu0 0.0
    %467 = vmatprep.subr.mxu0 0.0
    %468 = vmatpush1.msra.mxu0 0.0
    %469 = vmatprep.subr.mxu0 0.0
    %470 = vmatpush1.msra.mxu0 0.0
    %471 = vmatprep.subr.mxu0 0.0
    %472 = vmatpush1.msra.mxu0 0.0
    %473 = vmatprep.mubr.f32.mxu0 0.0
    %474 = vmatmul.mubr.f32.gmra.mrb[0].mxu0 %v407
    %v475 = vpop.f32.mrb[0].mxu0
    %v476 = vadd.f32 %v404, %v475
    %v477 = vpop.f32.mrb[0].mxu0
    %478 = vdwg.mxu0
    %vm479 = vcmask 254976
    %480 = vst.msk [vmem:[#allocation8] sm:$0x3] %vm479, %v476
    // Predicated region
    $region34: #{tpu_custom_call.1} parent=1 // pred_check
      _
    $region35: #{tpu_custom_call.1} parent=1 // pred_check_branch
      %482 = sbr.rel (0) target = $region37
    $region36: #{tpu_custom_call.1} parent=1 // pred_region
      %s484 = ssub.s32 32, 32
      %485 = vsyncadd [#allocation4], %s484
      %s487 = sshll.u32 [#allocation8], 4
      %s488 = int_to_ptr.vmem [resolvable:$true] %s487
      %490 = dma.vmem_to_hbm [thread:$0]  %s488, 32, %s5, [#allocation4]
    $region37: #{tpu_custom_call.1} parent=1 // pred_fallthru
      _
    // Predicated region
    $region38: #{tpu_custom_call.1} parent=1 // pred_check
      _
    $region39: #{tpu_custom_call.1} parent=1 // pred_check_branch
      %492 = sbr.rel (0) target = $region41
    $region40: #{tpu_custom_call.1} parent=1 // pred_region
      %493 = dma.done [#allocation4], 32
    $region41: #{tpu_custom_call.1} parent=1 // pred_fallthru
      _
    %494 = vsyncpa [#allocation3], 1
    %495 = vsyncpa [#allocation6], 1
    %496 = vsyncpa [#allocation4], 1

</llo_original>
